<compile_context>
chip_gen: v6e
topology: v6e:2x2x1
jax: 0.10.0
libtpu: 0.0.40
codegen_flags: <defaults>
</compile_context>

<pallas_src>
import functools

import jax
import jax.numpy as jnp
from jax import lax
from jax.experimental import pallas as pl
from jax.experimental.pallas import tpu as pltpu

N_BINS = 15
_BIN_PAD = 16     # 15 bins padded to 16 sublanes (row 15 is never hit)
_STAT_ROWS = 8    # [count, conf_sum, acc_sum, 0...] padded to a full sublane block


def _mce_kernel(logits_ref, labels_ref, out_ref, *, n_rows, blocks_per_slice):
    p = pl.program_id(0)          # "parallel" slice (megacore on v7x)
    j = pl.program_id(1)          # "arbitrary" reduction steps within the slice

    @pl.when(j == 0)
    def _():
        out_ref[...] = jnp.zeros_like(out_ref)

    x = logits_ref[...].astype(jnp.float32)                   # (C, TN), samples on lanes
    c, tn = x.shape

    # max(softmax) = 1 / sum(exp(x - m)); never materializes the probs tensor.
    m = jnp.max(x, axis=0, keepdims=True)                     # (1, TN)
    denom = jnp.sum(jnp.exp(x - m), axis=0, keepdims=True)    # (1, TN)
    conf = 1.0 / denom                                        # (1, TN), in (0, 1]

    # argmax on logits == argmax on softmax (monotone); first-max tie-break.
    cls = lax.broadcasted_iota(jnp.int32, (c, tn), 0)
    pred = jnp.min(jnp.where(x == m, cls, c), axis=0, keepdims=True)   # (1, TN)
    acc = (pred == labels_ref[...]).astype(jnp.float32)                # (1, TN)

    # Mask columns past the true N (ragged last block / clamped extra steps):
    # conf -> 0 falls in no bin, so those samples contribute to no statistic.
    # This mask also neutralizes NaN/garbage values read from block padding.
    col = ((p * blocks_per_slice + j) * tn
           + lax.broadcasted_iota(jnp.int32, (1, tn), 1))
    conf = jnp.where(col < n_rows, conf, 0.0)

    # Single-compare binning: conf in (k/15, (k+1)/15]  <=>  ceil(15*conf)-1 == k.
    bin_idx = jnp.ceil(conf * float(N_BINS)).astype(jnp.int32) - 1     # (1, TN)
    bins = lax.broadcasted_iota(jnp.int32, (_BIN_PAD, tn), 0)
    in_bin = (bins == bin_idx).astype(jnp.float32)                     # (16, TN)

    # Bin statistics on the otherwise-idle MXU (contract over TN lanes):
    #   stats[r, b] = sum_n s[r, n] * in_bin[b, n],  s rows = [1 | conf | acc | 0..]
    row = lax.broadcasted_iota(jnp.int32, (_STAT_ROWS, tn), 0)
    s = jnp.where(row == 0, 1.0,
                  jnp.where(row == 1, conf,
                            jnp.where(row == 2, acc, 0.0)))            # (8, TN)
    stats = lax.dot_general(s, in_bin, (((1,), (1,)), ((), ())),
                            preferred_element_type=jnp.float32)        # (8, 16)
    out_ref[...] += stats


def mce_loss(logits, labels, *, tn=None, n_slices=2):
    """logits: (N, C) float (f32 or bf16), labels: (N,) int -> scalar float32 MCE."""
    n, c = logits.shape
    itemsize = jnp.dtype(logits.dtype).itemsize

    if tn is None:
        # Per-lane VMEM bytes for one grid step: double-buffered logits block,
        # f32 upcast + exp temps, in_bin + s, and a generous allowance for the
        # sublane-padded (1, TN) row temps and the labels double buffer.
        per_lane = (2 * c * itemsize                   # logits (double-buffered)
                    + 2 * c * 4                        # f32 upcast + exp temp
                    + (_BIN_PAD + _STAT_ROWS) * 4      # in_bin + s
                    + 16 * 8 * 4)                      # row temps / labels (padded)
        tn = (16 * 1024 * 1024) // per_lane            # ~16 MiB/step vs 48 MiB limit
    tn = min(tn, ((n + 127) // 128) * 128)             # don't overshoot the array
    tn = max(128, (tn // 128) * 128)                   # multiple of 128 lanes

    n_blocks = pl.cdiv(n, tn)
    n_slices = max(1, min(n_slices, n_blocks))
    bps = pl.cdiv(n_blocks, n_slices)                  # column blocks per slice

    # Samples-on-lanes layout (layout plumbing only, done by XLA).
    logits_t = jnp.transpose(logits)                   # (C, N)
    labels_row = labels.reshape(1, n).astype(jnp.int32)

    def col_block(p, j):
        # Clamp over-assigned steps of the last slice; the kernel masks them out.
        return jnp.minimum(p * bps + j, n_blocks - 1)

    kernel = functools.partial(_mce_kernel, n_rows=n, blocks_per_slice=bps)

    partial_stats = pl.pallas_call(
        kernel,
        out_shape=jax.ShapeDtypeStruct((n_slices, _STAT_ROWS, _BIN_PAD), jnp.float32),
        grid_spec=pltpu.PrefetchScalarGridSpec(
            num_scalar_prefetch=0,
            grid=(n_slices, bps),
            in_specs=[
                pl.BlockSpec((c, tn), lambda p, j: (0, col_block(p, j))),
                pl.BlockSpec((1, tn), lambda p, j: (0, col_block(p, j))),
            ],
            out_specs=pl.BlockSpec((None, _STAT_ROWS, _BIN_PAD),
                                   lambda p, j: (p, 0, 0)),
        ),
        compiler_params=pltpu.CompilerParams(
            dimension_semantics=("parallel", "arbitrary"),   # slices x reduction
            vmem_limit_bytes=48 * 1024 * 1024,
        ),
        cost_estimate=pl.CostEstimate(
            flops=8 * n * c + 64 * n,
            transcendentals=n * c,
            bytes_accessed=n * c * itemsize + n * 4
                           + n_slices * _STAT_ROWS * _BIN_PAD * 4,
        ),
    )(logits_t, labels_row)

    # Tiny finalize in plain JAX: sum the per-slice slabs, gap per non-empty bin, max.
    totals = jnp.sum(partial_stats, axis=0)            # (8, 16)
    count = totals[0, :N_BINS]
    conf_sum = totals[1, :N_BINS]
    acc_sum = totals[2, :N_BINS]
    gap = jnp.abs(conf_sum - acc_sum) / jnp.maximum(count, 1.0)
    gap = jnp.where(count > 0.0, gap, -jnp.inf)        # empty bins are skipped
    return jnp.max(gap)


def _reference_mce(logits, labels):
    # pure-JAX reference mirroring the PyTorch module
    probs = jax.nn.softmax(logits.astype(jnp.float32), axis=1)
    conf = jnp.max(probs, axis=1)
    pred = jnp.argmax(probs, axis=1)
    acc = (pred == labels).astype(jnp.float32)
    edges = jnp.linspace(0.0, 1.0, N_BINS + 1)
    gaps = []
    for i in range(N_BINS):
        in_bin = (conf > edges[i]) & (conf <= edges[i + 1])
        cnt = jnp.sum(in_bin.astype(jnp.float32))
        a = jnp.sum(jnp.where(in_bin, acc, 0.0)) / jnp.maximum(cnt, 1.0)
        cm = jnp.sum(jnp.where(in_bin, conf, 0.0)) / jnp.maximum(cnt, 1.0)
        gaps.append(jnp.where(cnt > 0, jnp.abs(cm - a), -jnp.inf))
    return jnp.max(jnp.stack(gaps))


if __name__ == "__main__":
    key = jax.random.PRNGKey(0)
    k1, k2 = jax.random.split(key)
    N, C = 600, 16
    logits = jax.random.normal(k1, (N, C), dtype=jnp.float32) * 3.0
    labels = jax.random.randint(k2, (N,), 0, C, dtype=jnp.int32)

    ref = _reference_mce(logits, labels)

    # Small explicit tile: grid (2, 3) with a ragged last block and one clamped,
    # fully-masked extra step -> exercises accumulation, megacore split, masking.
    result = mce_loss(logits, labels, tn=128, n_slices=2)
    jax.block_until_ready(result)
    assert jnp.allclose(result, ref, atol=1e-5), (result, ref)

    # Auto-sized tile path (single large lane-dense block).
    result2 = mce_loss(logits, labels)
    jax.block_until_ready(result2)
    assert jnp.allclose(result2, ref, atol=1e-5), (result2, ref)

    print("KERNEL_OK")
</pallas_src>

<mosaic_0001>
module attributes {stable_mosaic.version = 11 : i64} {
  func.func @_mce_kernel(%arg0: i32, %arg1: i32, %arg2: memref<16x128xf32, #tpu.memory_space<vmem>>, %arg3: memref<1x128xi32, #tpu.memory_space<vmem>>, %arg4: memref<1x8x16xf32, #tpu.memory_space<vmem>>) attributes {dimension_semantics = [#tpu.dimension_semantics<parallel>, #tpu.dimension_semantics<arbitrary>], iteration_bounds = array<i64: 2, 3>, scalar_prefetch = 0 : i64, scratch_operands = 0 : i64, tpu.core_type = #tpu.core_type<tc>, window_params = [{transform_indices = @transform_0, window_bounds = array<i64: 16, 128>}, {transform_indices = @transform_1, window_bounds = array<i64: 1, 128>}, {transform_indices = @transform_2, window_bounds = array<i64: 1, 8, 16>}]} {
    %c0_i32 = arith.constant 0 : i32
    %0 = arith.cmpi eq, %arg1, %c0_i32 : i32
    %1 = arith.extui %0 : i1 to i32
    %c0_i32_0 = arith.constant 0 : i32
    %2 = arith.cmpi ne, %1, %c0_i32_0 : i32
    scf.if %2 {
      %cst_20 = arith.constant 0.000000e+00 : f32
      %68 = vector.broadcast %cst_20 : f32 to vector<8x16xf32>
      %c0_21 = arith.constant 0 : index
      %c0_22 = arith.constant 0 : index
      %c0_23 = arith.constant 0 : index
      %69 = vector.load %arg4[%c0_21, %c0_22, %c0_23] : memref<1x8x16xf32, #tpu.memory_space<vmem>>, vector<1x8x16xf32>
      %70 = vector.shape_cast %69 : vector<1x8x16xf32> to vector<8x16xf32>
      %71 = vector.shape_cast %68 : vector<8x16xf32> to vector<1x8x16xf32>
      tpu.vector_store %arg4[%c0_21, %c0_22, %c0_23], %71 {strides = array<i32>} : memref<1x8x16xf32, #tpu.memory_space<vmem>>, vector<1x8x16xf32>,
    } else {
    }
    %c0 = arith.constant 0 : index
    %c0_1 = arith.constant 0 : index
    %3 = vector.load %arg2[%c0, %c0_1] : memref<16x128xf32, #tpu.memory_space<vmem>>, vector<16x128xf32>
    %cst = arith.constant dense<0xFF800000> : vector<128xf32>
    %4 = vector.multi_reduction <maximumf>, %3, %cst [0] : vector<16x128xf32> to vector<128xf32>
    %5 = vector.shape_cast %4 : vector<128xf32> to vector<1x128xf32>
    %6 = vector.broadcast %5 : vector<1x128xf32> to vector<16x128xf32>
    %7 = arith.subf %3, %6 : vector<16x128xf32>
    %8 = math.exp %7 : vector<16x128xf32>
    %cst_2 = arith.constant dense<0.000000e+00> : vector<128xf32>
    %9 = vector.multi_reduction <add>, %8, %cst_2 [0] : vector<16x128xf32> to vector<128xf32>
    %10 = vector.shape_cast %9 : vector<128xf32> to vector<1x128xf32>
    %cst_3 = arith.constant 1.000000e+00 : f32
    %11 = vector.broadcast %cst_3 : f32 to vector<1x128xf32>
    %12 = arith.divf %11, %10 : vector<1x128xf32>
    %13 = tpu.iota {dimensions = array<i32: 0>} : vector<16x128xi32>
    %14 = vector.broadcast %5 : vector<1x128xf32> to vector<16x128xf32>
    %15 = arith.cmpf oeq, %3, %14 : vector<16x128xf32>
    %c16_i32 = arith.constant 16 : i32
    %16 = vector.broadcast %c16_i32 : i32 to vector<16x128xi32>
    %17 = arith.select %15, %13, %16 : vector<16x128xi1>, vector<16x128xi32>
    %cst_4 = arith.constant dense<2147483647> : vector<128xi32>
    %18 = vector.multi_reduction <minsi>, %17, %cst_4 [0] : vector<16x128xi32> to vector<128xi32>
    %19 = vector.shape_cast %18 : vector<128xi32> to vector<1x128xi32>
    %c0_5 = arith.constant 0 : index
    %c0_6 = arith.constant 0 : index
    %20 = vector.load %arg3[%c0_5, %c0_6] : memref<1x128xi32, #tpu.memory_space<vmem>>, vector<1x128xi32>
    %21 = arith.cmpi eq, %19, %20 : vector<1x128xi32>
    %22 = arith.extui %21 : vector<1x128xi1> to vector<1x128xi32>
    %23 = arith.sitofp %22 : vector<1x128xi32> to vector<1x128xf32>
    %c3_i32 = arith.constant 3 : i32
    %24 = arith.muli %arg0, %c3_i32 : i32
    %25 = arith.addi %24, %arg1 : i32
    %c128_i32 = arith.constant 128 : i32
    %26 = arith.muli %25, %c128_i32 : i32
    %27 = tpu.iota {dimensions = array<i32: 1>} : vector<1x128xi32>
    %28 = vector.broadcast %26 : i32 to vector<1x128xi32>
    %29 = arith.addi %28, %27 : vector<1x128xi32>
    %c600_i32 = arith.constant 600 : i32
    %30 = vector.broadcast %c600_i32 : i32 to vector<1x128xi32>
    %31 = arith.cmpi slt, %29, %30 : vector<1x128xi32>
    %cst_7 = arith.constant 0.000000e+00 : f32
    %32 = vector.broadcast %cst_7 : f32 to vector<1x128xf32>
    %33 = arith.select %31, %12, %32 : vector<1x128xi1>, vector<1x128xf32>
    %cst_8 = arith.constant 1.500000e+01 : f32
    %34 = vector.broadcast %cst_8 : f32 to vector<1x128xf32>
    %35 = arith.mulf %33, %34 : vector<1x128xf32>
    %36 = math.ceil %35 : vector<1x128xf32>
    %37 = arith.fptosi %36 : vector<1x128xf32> to vector<1x128xi32>
    %c1_i32 = arith.constant 1 : i32
    %38 = vector.broadcast %c1_i32 : i32 to vector<1x128xi32>
    %39 = arith.subi %37, %38 : vector<1x128xi32>
    %40 = tpu.iota {dimensions = array<i32: 0>} : vector<16x128xi32>
    %41 = vector.broadcast %39 : vector<1x128xi32> to vector<16x128xi32>
    %42 = arith.cmpi eq, %40, %41 : vector<16x128xi32>
    %43 = arith.extui %42 : vector<16x128xi1> to vector<16x128xi32>
    %44 = arith.sitofp %43 : vector<16x128xi32> to vector<16x128xf32>
    %45 = tpu.iota {dimensions = array<i32: 0>} : vector<8x128xi32>
    %c0_i32_9 = arith.constant 0 : i32
    %46 = vector.broadcast %c0_i32_9 : i32 to vector<8x128xi32>
    %47 = arith.cmpi eq, %45, %46 : vector<8x128xi32>
    %c1_i32_10 = arith.constant 1 : i32
    %48 = vector.broadcast %c1_i32_10 : i32 to vector<8x128xi32>
    %49 = arith.cmpi eq, %45, %48 : vector<8x128xi32>
    %c2_i32 = arith.constant 2 : i32
    %50 = vector.broadcast %c2_i32 : i32 to vector<8x128xi32>
    %51 = arith.cmpi eq, %45, %50 : vector<8x128xi32>
    %cst_11 = arith.constant 0.000000e+00 : f32
    %52 = vector.shape_cast %23 : vector<1x128xf32> to vector<1x128xf32>
    %53 = vector.broadcast %52 : vector<1x128xf32> to vector<8x128xf32>
    %54 = vector.broadcast %cst_11 : f32 to vector<8x128xf32>
    %55 = arith.select %51, %53, %54 : vector<8x128xi1>, vector<8x128xf32>
    %56 = vector.shape_cast %33 : vector<1x128xf32> to vector<1x128xf32>
    %57 = vector.broadcast %56 : vector<1x128xf32> to vector<8x128xf32>
    %58 = arith.select %49, %57, %55 : vector<8x128xi1>, vector<8x128xf32>
    %cst_12 = arith.constant 1.000000e+00 : f32
    %59 = vector.broadcast %cst_12 : f32 to vector<8x128xf32>
    %60 = arith.select %47, %59, %58 : vector<8x128xi1>, vector<8x128xf32>
    %cst_13 = arith.constant dense<0.000000e+00> : vector<8x16xf32>
    %61 = tpu.matmul %60, %44, %cst_13 {dimension_numbers = #tpu.dot_dimension_numbers<[1], [1], [0], [0], [0, 0, 1, 0], [], []>} : vector<8x128xf32>, vector<16x128xf32>, vector<8x16xf32> -> vector<8x16xf32>
    %c0_14 = arith.constant 0 : index
    %c0_15 = arith.constant 0 : index
    %c0_16 = arith.constant 0 : index
    %62 = vector.load %arg4[%c0_14, %c0_15, %c0_16] : memref<1x8x16xf32, #tpu.memory_space<vmem>>, vector<1x8x16xf32>
    %63 = vector.shape_cast %62 : vector<1x8x16xf32> to vector<8x16xf32>
    %64 = arith.addf %63, %61 : vector<8x16xf32>
    %c0_17 = arith.constant 0 : index
    %c0_18 = arith.constant 0 : index
    %c0_19 = arith.constant 0 : index
    %65 = vector.load %arg4[%c0_17, %c0_18, %c0_19] : memref<1x8x16xf32, #tpu.memory_space<vmem>>, vector<1x8x16xf32>
    %66 = vector.shape_cast %65 : vector<1x8x16xf32> to vector<8x16xf32>
    %67 = vector.shape_cast %64 : vector<8x16xf32> to vector<1x8x16xf32>
    tpu.vector_store %arg4[%c0_17, %c0_18, %c0_19], %67 {strides = array<i32>} : memref<1x8x16xf32, #tpu.memory_space<vmem>>, vector<1x8x16xf32>,
    return
  }
  func.func @transform_0(%arg0: i32, %arg1: i32) -> (i32, i32) {
    %c3_i32 = arith.constant 3 : i32
    %0 = arith.muli %arg0, %c3_i32 : i32
    %1 = arith.addi %0, %arg1 : i32
    %c4_i32 = arith.constant 4 : i32
    %2 = arith.minsi %1, %c4_i32 : i32
    %c0_i32 = arith.constant 0 : i32
    %c0_i32_0 = arith.constant 0 : i32
    return %c0_i32, %2 : i32, i32
  }
  func.func @transform_1(%arg0: i32, %arg1: i32) -> (i32, i32) {
    %c3_i32 = arith.constant 3 : i32
    %0 = arith.muli %arg0, %c3_i32 : i32
    %1 = arith.addi %0, %arg1 : i32
    %c4_i32 = arith.constant 4 : i32
    %2 = arith.minsi %1, %c4_i32 : i32
    %c0_i32 = arith.constant 0 : i32
    %c0_i32_0 = arith.constant 0 : i32
    return %c0_i32, %2 : i32, i32
  }
  func.func @transform_2(%arg0: i32, %arg1: i32) -> (i32, i32, i32) {
    %c0_i32 = arith.constant 0 : i32
    %c0_i32_0 = arith.constant 0 : i32
    %c0_i32_1 = arith.constant 0 : i32
    return %arg0, %c0_i32, %c0_i32_0 : i32, i32, i32
  }
}

</mosaic_0001>

<llo_original>
// kernel: tpu_custom_call.1
$region0: #{tpu_custom_call.1}
  #allocation0 [shape = 'u32[]', space=smem, size = 0x4, offset = 0x4, fixed_abs, tag = 'smem constant byte address 0x4 - core index']
  #allocation1 [shape = 'u32[144,128]{1,0:T(1,128)}', space=vmem, size = 0x12000, scoped, tag = 'internal scratch']
  %s0 = inlined_call_operand.hbm [shape: f32[16,600], index: 0, kind: input, shape index: {}]
  %s1 = inlined_call_operand.hbm [shape: s32[1,600], index: 1, kind: input, shape index: {}]
  %s2 = inlined_call_operand.hbm [shape: f32[2,8,16], index: 2, kind: output, shape index: {}]
  %s3 = sld [smem:[#allocation0]]
  $region53: #{tpu_custom_call.1} parent=0
    _
  %s5 = ssub.s32 1, %s3
  %s6 = scalar_select 0, %s5, %s3
  $region1: #{tpu_custom_call.1} parent=0
    #allocation2 [shape = 'u8[16384]{0}', space=vmem, size = 0x4000, scoped, tag = 'input window, operand 0']
    #allocation3 [shape = 's32[2]{0}', space=sflag, size = 0x8, scoped, tag = 'scoped memory for tpu_custom_call.1']
    #allocation4 [shape = 's32[2]{0}', space=sflag, size = 0x8, scoped, tag = 'scoped memory for tpu_custom_call.1']
    #allocation5 [shape = 'u8[1024]{0}', space=vmem, size = 0x400, scoped, tag = 'input window, operand 1']
    #allocation6 [shape = 's32[2]{0}', space=sflag, size = 0x8, scoped, tag = 'scoped memory for tpu_custom_call.1']
    #allocation7 [shape = 'u8[8192]{0}', space=vmem, size = 0x2000, scoped, tag = 'output window, operand 0']
    %7 = vsyncpa [#allocation3], 0
    %s8 = scalar_lea.sflag [#allocation3], 1
    %9 = vsyncpa %s8, 0
    %10 = vsyncpa [#allocation6], 0
    %s11 = scalar_lea.sflag [#allocation6], 1
    %12 = vsyncpa %s11, 0
    %13 = vsyncpa [#allocation4], 0
    %s14 = scalar_lea.sflag [#allocation4], 1
    %15 = vsyncpa %s14, 0
    loop: start=0, step=1, limit=8
    $region2: #{tpu_custom_call.1} parent=1 // loop_pre_header
      _
    $region3: #{tpu_custom_call.1} parent=1 // loop_header
      %s17 = sphi 0, %s21
      %p18 = scmp.ge.s32.totalorder %s17, 8
      %s24 = sphi 0, %s36
      %s25 = sphi 0, %s32
      %s26 = sphi 0, %s24
      %s27 = sphi 0, %s25
      %s28 = sphi 0, %s26
      %s29 = sphi 0, %s27
      %s47 = sphi 0, %s49
      %s50 = sphi 0, %s47
      %s51 = sphi 0, %s50
      %s67 = sphi 0, %s51
      %s81 = sphi 0, %s83
      %s84 = sphi 0, %s81
      %s85 = sphi 0, %s84
      %s101 = sphi 0, %s85
      %s107 = sphi 0, %s109
      %s110 = sphi 0, %s107
      %s111 = sphi 0, %s110
      %s127 = sphi 0, %s111
    $region4: #{tpu_custom_call.1} parent=1 // loop_header_branch
      %20 = sbr.rel (%p18) target = $region8
    $region5: #{tpu_custom_call.1} parent=1 // loop_body
      %s22 = ssub.s32 %s17, 1
      %s23 = ssub.s32 %s17, 2
      %s30 = sadd.s32 1, %s25
      %p31 = scmp.ge.s32.totalorder %s30, 3
      %s32 = scalar_select %p31, 0, %s30
      %s33 = sadd.s32 1, %s24
      %s34 = scalar_select %p31, %s33, %s24
      %p35 = scmp.ge.s32.totalorder %s34, 2
      %s36 = scalar_select %p35, 0, %s34
      %s37 = smul.u32 %s24, 3
      %s38 = sadd.s32 %s37, %s25
      %p39 = scmp.lt.s32.totalorder %s38, 4
      %s40 = scalar_select %p39, %s38, 4
      %s41 = smul.u32 %s36, 3
      %s42 = sadd.s32 %s41, %s32
      %p43 = scmp.lt.s32.totalorder %s42, 4
      %s44 = scalar_select %p43, %s42, 4
      %s45 = ssub.s32 %s40, %s44
      %p46 = scmp.eq.s32.totalorder %s45, 0
      %s48 = sadd.s32 %s47, 1
      %s49 = scalar_select %p46, %s47, %s48
      %p52 = pneg %p46
      %p53 = scmp.eq.s32.totalorder %s17, 5
      %p54 = por %p52, %p53
      %p55 = scmp.ne.s32.totalorder %s47, %s50
      %p56 = scmp.eq.s32.totalorder %s17, 0
      %p57 = por %p55, %p56
      %p58 = scmp.ne.s32.totalorder %s47, %s50
      %p59 = scmp.eq.s32.totalorder %s22, 5
      %p60 = por %p58, %p59
      %p61 = scmp.ne.s32.totalorder %s50, %s51
      %p62 = scmp.eq.s32.totalorder %s22, 0
      %p63 = por %p61, %p62
      %p64 = scmp.ne.s32.totalorder %s50, %s51
      %p65 = scmp.eq.s32.totalorder %s23, 5
      %p66 = por %p64, %p65
      %p68 = scmp.ne.s32.totalorder %s51, %s67
      %p69 = scmp.eq.s32.totalorder %s23, 0
      %p70 = por %p68, %p69
      %s71 = smul.u32 %s24, 3
      %s72 = sadd.s32 %s71, %s25
      %p73 = scmp.lt.s32.totalorder %s72, 4
      %s74 = scalar_select %p73, %s72, 4
      %s75 = smul.u32 %s36, 3
      %s76 = sadd.s32 %s75, %s32
      %p77 = scmp.lt.s32.totalorder %s76, 4
      %s78 = scalar_select %p77, %s76, 4
      %s79 = ssub.s32 %s74, %s78
      %p80 = scmp.eq.s32.totalorder %s79, 0
      %s82 = sadd.s32 %s81, 1
      %s83 = scalar_select %p80, %s81, %s82
      %p86 = pneg %p80
      %p87 = scmp.eq.s32.totalorder %s17, 5
      %p88 = por %p86, %p87
      %p89 = scmp.ne.s32.totalorder %s81, %s84
      %p90 = scmp.eq.s32.totalorder %s17, 0
      %p91 = por %p89, %p90
      %p92 = scmp.ne.s32.totalorder %s81, %s84
      %p93 = scmp.eq.s32.totalorder %s22, 5
      %p94 = por %p92, %p93
      %p95 = scmp.ne.s32.totalorder %s84, %s85
      %p96 = scmp.eq.s32.totalorder %s22, 0
      %p97 = por %p95, %p96
      %p98 = scmp.ne.s32.totalorder %s84, %s85
      %p99 = scmp.eq.s32.totalorder %s23, 5
      %p100 = por %p98, %p99
      %p102 = scmp.ne.s32.totalorder %s85, %s101
      %p103 = scmp.eq.s32.totalorder %s23, 0
      %p104 = por %p102, %p103
      %s105 = ssub.s32 %s24, %s36
      %p106 = scmp.eq.s32.totalorder %s105, 0
      %s108 = sadd.s32 %s107, 1
      %s109 = scalar_select %p106, %s107, %s108
      %p112 = pneg %p106
      %p113 = scmp.eq.s32.totalorder %s17, 5
      %p114 = por %p112, %p113
      %p115 = scmp.ne.s32.totalorder %s107, %s110
      %p116 = scmp.eq.s32.totalorder %s17, 0
      %p117 = por %p115, %p116
      %p118 = scmp.ne.s32.totalorder %s107, %s110
      %p119 = scmp.eq.s32.totalorder %s22, 5
      %p120 = por %p118, %p119
      %p121 = scmp.ne.s32.totalorder %s110, %s111
      %p122 = scmp.eq.s32.totalorder %s22, 0
      %p123 = por %p121, %p122
      %p124 = scmp.ne.s32.totalorder %s110, %s111
      %p125 = scmp.eq.s32.totalorder %s23, 5
      %p126 = por %p124, %p125
      %p128 = scmp.ne.s32.totalorder %s111, %s127
      %p129 = scmp.eq.s32.totalorder %s23, 0
      %p130 = por %p128, %p129
      %p131 = scmp.le.s32.totalorder 1, %s17
      %p132 = scmp.lt.s32.totalorder %s17, 7
      %p133 = pnand %p131, %p132
      %p134 = pneg %p133
      // Predicated region
      $region9: #{tpu_custom_call.1} parent=5 // pred_check
        _
      $region10: #{tpu_custom_call.1} parent=5 // pred_check_branch
        %136 = sbr.rel (%p133) target = $region12
      $region11: #{tpu_custom_call.1} parent=5 // pred_region
        %s137 = ssub.s32 %s17, 1
      $region12: #{tpu_custom_call.1} parent=5 // pred_fallthru
        _
      %p138 = scmp.lt.s32.totalorder %s17, 6
      // Predicated region
      $region13: #{tpu_custom_call.1} parent=5 // pred_check
        %p139 = pneg %p138
      $region14: #{tpu_custom_call.1} parent=5 // pred_check_branch
        %141 = sbr.rel (%p139) target = $region16
      $region15: #{tpu_custom_call.1} parent=5 // pred_region
        // Predicated region
        $region17: #{tpu_custom_call.1} parent=15 // pred_check
          %p142 = pneg %p57
        $region18: #{tpu_custom_call.1} parent=15 // pred_check_branch
          %144 = sbr.rel (%p142) target = $region20
        $region19: #{tpu_custom_call.1} parent=15 // pred_region
          %s145 = sand.u32 %s47, 1
          %s146 = scalar_lea.sflag [#allocation3], %s145
          %s147 = sand.u32 %s47, 1
          %s148 = smul.addr %s147, 16
          %s149 = scalar_lea.vmem [#allocation2], %s148
          %s150 = smul.u32 %s24, 3
          %s151 = sadd.s32 %s150, %s25
          %p152 = scmp.lt.s32.totalorder %s151, 4
          %s153 = scalar_select %p152, %s151, 4
          %s155 = ssub.s32 256, 256
          %156 = vsyncadd %s146, %s155
          %s157 = smul.addr %s153, 128
          %s158 = scalar_lea.hbm %s0, %s157
          %s159 = sshll.u32 %s149, 4
          %s160 = int_to_ptr.vmem [resolvable:$true] %s159
          %165 = dma.hbm_to_vmem [thread:$0]  %s158, 256, %s160, %s146, 640, 128, 8
        $region20: #{tpu_custom_call.1} parent=15 // pred_fallthru
          _
        // Predicated region
        $region21: #{tpu_custom_call.1} parent=15 // pred_check
          %p166 = pneg %p91
        $region22: #{tpu_custom_call.1} parent=15 // pred_check_branch
          %168 = sbr.rel (%p166) target = $region24
        $region23: #{tpu_custom_call.1} parent=15 // pred_region
          %s169 = sand.u32 %s81, 1
          %s170 = scalar_lea.sflag [#allocation6], %s169
          %s171 = sand.u32 %s81, 1
          %s172 = scalar_lea.vmem [#allocation5], %s171
          %s173 = smul.u32 %s24, 3
          %s174 = sadd.s32 %s173, %s25
          %p175 = scmp.lt.s32.totalorder %s174, 4
          %s176 = scalar_select %p175, %s174, 4
          %s178 = ssub.s32 16, 16
          %179 = vsyncadd %s170, %s178
          %s180 = smul.addr %s176, 16
          %s181 = scalar_lea.hbm %s1, %s180
          %s183 = sshll.u32 %s172, 4
          %s184 = int_to_ptr.vmem [resolvable:$true] %s183
          %186 = dma.hbm_to_vmem [thread:$0]  %s181, 16, %s184, %s170
        $region24: #{tpu_custom_call.1} parent=15 // pred_fallthru
          _
      $region16: #{tpu_custom_call.1} parent=5 // pred_fallthru
        _
      %p187 = scmp.le.s32.totalorder 1, %s17
      %p188 = scmp.lt.s32.totalorder %s17, 7
      %p189 = pnand %p187, %p188
      %p190 = pneg %p189
      // Predicated region
      $region25: #{tpu_custom_call.1} parent=5 // pred_check
        _
      $region26: #{tpu_custom_call.1} parent=5 // pred_check_branch
        %192 = sbr.rel (%p189) target = $region28
      $region27: #{tpu_custom_call.1} parent=5 // pred_region
        %s193 = ssub.s32 %s17, 1
        %s194 = sand.u32 %s50, 1
        %s195 = scalar_lea.sflag [#allocation3], %s194
        %s196 = sand.u32 %s50, 1
        %s197 = smul.addr %s196, 16
        %s198 = scalar_lea.vmem [#allocation2], %s197
        // Predicated region
        $region29: #{tpu_custom_call.1} parent=27 // pred_check
          %p199 = pneg %p63
        $region30: #{tpu_custom_call.1} parent=27 // pred_check_branch
          %201 = sbr.rel (%p199) target = $region32
        $region31: #{tpu_custom_call.1} parent=27 // pred_region
          %202 = dma.done %s195, 256
        $region32: #{tpu_custom_call.1} parent=27 // pred_fallthru
          _
        %s203 = sand.u32 %s84, 1
        %s204 = scalar_lea.sflag [#allocation6], %s203
        %s205 = sand.u32 %s84, 1
        %s206 = scalar_lea.vmem [#allocation5], %s205
        // Predicated region
        $region33: #{tpu_custom_call.1} parent=27 // pred_check
          %p207 = pneg %p97
        $region34: #{tpu_custom_call.1} parent=27 // pred_check_branch
          %209 = sbr.rel (%p207) target = $region36
        $region35: #{tpu_custom_call.1} parent=27 // pred_region
          %210 = dma.done %s204, 16
        $region36: #{tpu_custom_call.1} parent=27 // pred_fallthru
          _
        %s211 = sand.u32 %s50, 1
        %s212 = scalar_lea.sflag [#allocation3], %s211
        %s213 = sand.u32 %s50, 1
        %s214 = smul.addr %s213, 16
        %s215 = scalar_lea.vmem [#allocation2], %s214
        %p216 = pneg %p63
        %p217 = pneg %p60
        %s218 = sand.u32 %s84, 1
        %s219 = scalar_lea.sflag [#allocation6], %s218
        %s220 = sand.u32 %s84, 1
        %s221 = scalar_lea.vmem [#allocation5], %s220
        %p222 = pneg %p97
        %p223 = pneg %p94
        %p224 = pneg %p123
        %p225 = pneg %p120
        %s226 = sand.u32 %s110, 1
        %s227 = scalar_lea.sflag [#allocation4], %s226
        %s228 = sand.u32 %s110, 1
        %s229 = smul.addr %s228, 8
        %s230 = scalar_lea.vmem [#allocation7], %s229
        %s231 = smul.u32 %s26, 3
        %s232 = sadd.s32 %s231, %s27
        %p233 = scmp.lt.s32.totalorder %s232, 4
        %s234 = scalar_select %p233, %s232, 4
        %s235 = smul.u32 %s26, 3
        %s236 = sadd.s32 %s235, %s27
        %p237 = scmp.lt.s32.totalorder %s236, 4
        %s238 = scalar_select %p237, %s236, 4
        %p239 = scmp.eq.s32.totalorder %s27, 0
        // Predicated region
        $region37: #{tpu_custom_call.1} parent=27 // pred_check
          %p240 = pneg %p239
        $region38: #{tpu_custom_call.1} parent=27 // pred_check_branch
          %242 = sbr.rel (%p240) target = $region40
        $region39: #{tpu_custom_call.1} parent=27 // pred_region
          %vm243 = vcmask 130048
          %244 = vst.msk [vmem:[%s230] sm:$0xff] %vm243, 0.0
        $region40: #{tpu_custom_call.1} parent=27 // pred_fallthru
          _
        %v245 = vld [vmem:[%s198] sm:$0xff]
        %v246 = vld [vmem:[%s198 + $0x8] sm:$0xff]
        %v247 = vmax.f32 %v245, %v246
        %v248 = vrot.slane %v247, 4
        %v249 = vmax.f32 %v247, %v248
        %v250 = vrot.slane %v249, 2
        %v251 = vmax.f32 %v249, %v250
        %v252 = vrot.slane %v251, 1
        %v253 = vmax.f32 %v251, %v252
        %v254 = vsub.f32 %v245, %v253
        %v255 = vsub.f32 %v246, %v253
        %v256 = vmul.f32 %v254, 1.442695
        %v257 = vpow.pop %v256
        %v258 = vmul.f32 %v255, 1.442695
        %v259 = vpow.pop %v258
        %v260 = vadd.f32 %v257, %v259
        %v261 = vrot.slane %v260, 4
        %v262 = vadd.f32 %v260, %v261
        %v263 = vrot.slane %v262, 2
        %v264 = vadd.f32 %v262, %v263
        %v265 = vrot.slane %v264, 1
        %v266 = vadd.f32 %v264, %v265
        %v267 = vrcp.pop %v266
        %v268 = vmul.f32 1.0, %v267
        %v269 = vlaneseq
        %v270 = vshrl.u32 %v269, 7
        %v271 = vadd.s32 %v270, 8
        %vm272 = vcmp.eq.f32.partialorder %v245, %v253
        %vm273 = vcmp.eq.f32.partialorder %v246, %v253
        %v274 = vsel %vm272, %v270, 16
        %v275 = vsel %vm273, %v271, 16
        %vm276 = vcmp.lt.s32.totalorder %v274, %v275
        %v277 = vsel %vm276, %v274, %v275
        %v278 = vrot.slane %v277, 4
        %vm279 = vcmp.lt.s32.totalorder %v277, %v278
        %v280 = vsel %vm279, %v277, %v278
        %v281 = vrot.slane %v280, 2
        %vm282 = vcmp.lt.s32.totalorder %v280, %v281
        %v283 = vsel %vm282, %v280, %v281
        %v284 = vrot.slane %v283, 1
        %vm285 = vcmp.lt.s32.totalorder %v283, %v284
        %v286 = vsel %vm285, %v283, %v284
        %v287 = vld [vmem:[%s206] sm:$0x1]
        %vm288 = vcmp.eq.s32.totalorder %v286, %v287
        %v289 = vsel %vm288, 1, 0
        %v290 = vcvt.s32.f32 %v289
        %s291 = smul.u32 %s26, 3
        %s292 = sadd.s32 %s291, %s27
        %s293 = smul.u32 %s292, 128
        %v294 = vlaneseq
        %v295 = vand.u32 %v294, 127
        %v296 = vstv %s293
        %v297 = vadd.s32 %v296, %v295
        %vm298 = vcmp.lt.s32.totalorder %v297, 600
        %v299 = vsel %vm298, %v268, 0.0
        %v300 = vmul.f32 %v299, 15.0
        %v301 = vceil.f32 %v300
        %v302 = vcvt.f32.s32.to.zero.pseudo %v301
        %v303 = vsub.s32 %v302, 1
        %vm304 = vcmp.eq.s32.totalorder %v270, %v303
        %vm305 = vcmp.eq.s32.totalorder %v271, %v303
        %v306 = vsel %vm304, 1, 0
        %v307 = vsel %vm305, 1, 0
        %v308 = vcvt.s32.f32 %v306
        %v309 = vcvt.s32.f32 %v307
        %vm310 = vcmp.eq.s32.totalorder %v270, 0
        %vm311 = vcmp.eq.s32.totalorder %v270, 1
        %vm312 = vcmp.eq.s32.totalorder %v270, 2
        %v313 = vlaneseq
        %v314 = vshrl.u32 %v313, 7
        %v315 = vsub.s32 0, %v314
        %v316 = vrot.slane %v290, %v315
        %v317 = vsel %vm312, %v316, 0.0
        %v318 = vsel %vm311, %v299, %v317
        %v319 = vsel %vm310, 1.0, %v318
        %320 = vmatprep.subr.mxu0 0.0
        %321 = vmatpush1.xpose.msra.mxu0 0.0
        %322 = vmatprep.subr.mxu0 0.0
        %323 = vmatpush1.xpose.msra.mxu0 0.0
        %324 = vmatprep.subr.mxu0 0.0
        %325 = vmatpush1.xpose.msra.mxu0 0.0
        %326 = vmatprep.subr.mxu0 0.0
        %327 = vmatpush1.xpose.msra.mxu0 0.0
        %328 = vmatprep.subr.mxu0 0.0
        %329 = vmatpush1.xpose.msra.mxu0 0.0
        %330 = vmatprep.subr.mxu0 0.0
        %331 = vmatpush1.xpose.msra.mxu0 0.0
        %332 = vmatprep.subr.mxu0 0.0
        %333 = vmatpush1.xpose.msra.mxu0 0.0
        %334 = vmatprep.subr.mxu0 0.0
        %335 = vmatpush1.xpose.msra.mxu0 0.0
        %336 = vmatprep.subr.mxu0 0.0
        %337 = vmatpush1.xpose.msra.mxu0 0.0
        %338 = vmatprep.subr.mxu0 0.0
        %339 = vmatpush1.xpose.msra.mxu0 0.0
        %340 = vmatprep.subr.mxu0 0.0
        %341 = vmatpush1.xpose.msra.mxu0 0.0
        %342 = vmatprep.subr.mxu0 0.0
        %343 = vmatpush1.xpose.msra.mxu0 0.0
        %344 = vmatprep.subr.mxu0 0.0
        %345 = vmatpush1.xpose.msra.mxu0 0.0
        %346 = vmatprep.subr.mxu0 0.0
        %347 = vmatpush1.xpose.msra.mxu0 0.0
        %348 = vmatprep.subr.mxu0 0.0
        %349 = vmatpush1.xpose.msra.mxu0 %v309
        %350 = vmatprep.subr.mxu0 0.0
        %351 = vmatpush1.xpose.msra.mxu0 %v308
        %352 = vmatprep.subr.mxu0 0.0
        %353 = vmatpush2.xpose.msra.mxu0 0.0
        %354 = vmatprep.subr.mxu0 0.0
        %355 = vmatpush2.xpose.msra.mxu0 0.0
        %356 = vmatprep.subr.mxu0 0.0
        %357 = vmatpush2.xpose.msra.mxu0 0.0
        %358 = vmatprep.subr.mxu0 0.0
        %359 = vmatpush2.xpose.msra.mxu0 0.0
        %360 = vmatprep.subr.mxu0 0.0
        %361 = vmatpush2.xpose.msra.mxu0 0.0
        %362 = vmatprep.subr.mxu0 0.0
        %363 = vmatpush2.xpose.msra.mxu0 0.0
        %364 = vmatprep.subr.mxu0 0.0
        %365 = vmatpush2.xpose.msra.mxu0 0.0
        %366 = vmatprep.subr.mxu0 0.0
        %367 = vmatpush2.xpose.msra.mxu0 0.0
        %368 = vmatprep.subr.mxu0 0.0
        %369 = vmatpush2.xpose.msra.mxu0 0.0
        %370 = vmatprep.subr.mxu0 0.0
        %371 = vmatpush2.xpose.msra.mxu0 0.0
        %372 = vmatprep.subr.mxu0 0.0
        %373 = vmatpush2.xpose.msra.mxu0 0.0
        %374 = vmatprep.subr.mxu0 0.0
        %375 = vmatpush2.xpose.msra.mxu0 0.0
        %376 = vmatprep.subr.mxu0 0.0
        %377 = vmatpush2.xpose.msra.mxu0 0.0
        %378 = vmatprep.subr.mxu0 0.0
        %379 = vmatpush2.xpose.msra.mxu0 0.0
        %380 = vmatprep.subr.mxu0 0.0
        %381 = vmatpush2.xpose.msra.mxu0 0.0
        %382 = vmatprep.subr.mxu0 0.0
        %383 = vmatpush2.xpose.msra.mxu0 0.0
        %384 = vmatprep.mubr.f32.mxu0 0.0
        %385 = vmatmul.mubr.f32.gmra.mxu0 %v319
        %v386 = vpop.f32.mrf.mxu0
        %v387 = vadd.f32 0.0, %v386
        %v388 = vpop.f32.mrf.mxu0
        %389 = vdwg.mxu0
        %v390 = vld [vmem:[%s230] sm:$0xff]
        %v391 = vadd.f32 %v390, %v387
        %vm392 = vcmask 130048
        %393 = vst.msk [vmem:[%s230] sm:$0xff] %vm392, %v391
        %s394 = sand.u32 %s110, 1
        %s395 = scalar_lea.sflag [#allocation4], %s394
        %s396 = sand.u32 %s110, 1
        %s397 = smul.addr %s396, 8
        %s398 = scalar_lea.vmem [#allocation7], %s397
        // Predicated region
        $region41: #{tpu_custom_call.1} parent=27 // pred_check
          %p399 = pneg %p120
        $region42: #{tpu_custom_call.1} parent=27 // pred_check_branch
          %401 = sbr.rel (%p399) target = $region44
        $region43: #{tpu_custom_call.1} parent=27 // pred_region
          %s403 = ssub.s32 128, 128
          %404 = vsyncadd %s395, %s403
          %s405 = smul.addr %s26, 128
          %s406 = scalar_lea.hbm %s2, %s405
          %s408 = sshll.u32 %s398, 4
          %s409 = int_to_ptr.vmem [resolvable:$true] %s408
          %411 = dma.vmem_to_hbm [thread:$0]  %s409, 128, %s406, %s395
        $region44: #{tpu_custom_call.1} parent=27 // pred_fallthru
          _
      $region28: #{tpu_custom_call.1} parent=5 // pred_fallthru
        _
      %p412 = scmp.le.s32.totalorder 2, %s17
      // Predicated region
      $region45: #{tpu_custom_call.1} parent=5 // pred_check
        %p413 = pneg %p412
      $region46: #{tpu_custom_call.1} parent=5 // pred_check_branch
        %415 = sbr.rel (%p413) target = $region48
      $region47: #{tpu_custom_call.1} parent=5 // pred_region
        %s416 = ssub.s32 %s17, 2
        // Predicated region
        $region49: #{tpu_custom_call.1} parent=47 // pred_check
          %p417 = pneg %p126
        $region50: #{tpu_custom_call.1} parent=47 // pred_check_branch
          %419 = sbr.rel (%p417) target = $region52
        $region51: #{tpu_custom_call.1} parent=47 // pred_region
          %s420 = sand.u32 %s111, 1
          %s421 = scalar_lea.sflag [#allocation4], %s420
          %s422 = sand.u32 %s111, 1
          %s423 = smul.addr %s422, 8
          %s424 = scalar_lea.vmem [#allocation7], %s423
          %425 = dma.done %s421, 128
        $region52: #{tpu_custom_call.1} parent=47 // pred_fallthru
          _
      $region48: #{tpu_custom_call.1} parent=5 // pred_fallthru
        _
    $region6: #{tpu_custom_call.1} parent=1 // loop_footer
      %s21 = sadd.s32 1, %s17
    $region7: #{tpu_custom_call.1} parent=1 // loop_footer_branch
      %16 = sbr.rel target = $region3
    $region8: #{tpu_custom_call.1} parent=1 // loop_exit
      _
    %426 = vsyncpa [#allocation3], 1
    %s427 = scalar_lea.sflag [#allocation3], 1
    %428 = vsyncpa %s427, 1
    %429 = vsyncpa [#allocation6], 1
    %s430 = scalar_lea.sflag [#allocation6], 1
    %431 = vsyncpa %s430, 1
    %432 = vsyncpa [#allocation4], 1
    %s433 = scalar_lea.sflag [#allocation4], 1
    %434 = vsyncpa %s433, 1

</llo_original>
